<compile_context>
chip_gen: v5e
topology: v5e:2x2
jax: 0.10.0
libtpu: 0.0.40
codegen_flags: <defaults>
</compile_context>

<pallas_src>
import functools

import jax
import jax.numpy as jnp
from jax.experimental import pallas as pl
from jax.experimental.pallas import tpu as pltpu


def _round_up(x, m):
    return ((x + m - 1) // m) * m


def _vmem_capacity_bytes():
    """Per-core VMEM capacity, with a conservative (v7x) fallback."""
    try:
        cap = int(pltpu.get_tpu_info().vmem_capacity_bytes)
        if cap > 0:
            return cap
    except Exception:
        pass
    return 64 << 20


# ---------------------------------------------------------------------------
# Path 1: weight resident in VMEM, batch-streamed x/o (small / medium vocab).
# ---------------------------------------------------------------------------
def _netty_resident_kernel(x_ref, w_ref, b_ref, o_ref):
    # x_ref: (TB, F) f32   w_ref: (F, V) bf16   b_ref: (1, V) f32   o_ref: (TB, V)
    xb = x_ref[...].astype(jnp.bfloat16)              # in-kernel cast (VPU, free slack)
    logits = jnp.dot(xb, w_ref[...], preferred_element_type=jnp.float32) + b_ref[...]
    m = jnp.max(logits, axis=-1, keepdims=True)       # XLU
    e = jnp.exp(logits - m)                           # EUP
    denom = jnp.sum(e, axis=-1, keepdims=True)
    inv = pl.reciprocal(denom, approx=False)          # exact: row sums == 1 (f32)
    o_ref[...] = (e * inv).astype(o_ref.dtype)


def _netty_resident(x, w, b, *, tb, out_dtype, vmem_limit):
    Bp, F = x.shape
    _, V = w.shape
    out_bytes = jnp.dtype(out_dtype).itemsize
    cost = pl.CostEstimate(
        flops=2 * Bp * F * V,
        transcendentals=Bp * V,
        bytes_accessed=4 * Bp * F + 2 * F * V + 4 * V + out_bytes * Bp * V,
    )
    return pl.pallas_call(
        _netty_resident_kernel,
        out_shape=jax.ShapeDtypeStruct((Bp, V), out_dtype),
        grid_spec=pltpu.PrefetchScalarGridSpec(
            num_scalar_prefetch=0,
            grid=(Bp // tb,),
            in_specs=[
                pl.BlockSpec((tb, F), lambda i: (i, 0)),   # f32 x streamed per batch tile
                pl.BlockSpec((F, V), lambda i: (0, 0)),    # bf16 W resident across grid
                pl.BlockSpec((1, V), lambda i: (0, 0)),    # bias resident across grid
            ],
            out_specs=pl.BlockSpec((tb, V), lambda i: (i, 0)),  # lane-dense output
        ),
        compiler_params=pltpu.CompilerParams(
            dimension_semantics=("parallel",),
            vmem_limit_bytes=int(vmem_limit),
        ),
        cost_estimate=cost,
    )(x, w, b)


# ---------------------------------------------------------------------------
# Path 2: V-tiled 2-pass online softmax (weight does not fit VMEM).
# Pass 0 (p == 0): accumulate running max m and sum l across vocab tiles.
# Pass 1 (p == 1): recompute logits, store exp(s - m) / l.
# ---------------------------------------------------------------------------
def _netty_vtiled_kernel(x_ref, w_ref, b_ref, o_ref, m_ref, l_ref):
    p = pl.program_id(1)

    @pl.when((p == 0) & (pl.program_id(2) == 0))
    def _():
        m_ref[...] = jnp.full_like(m_ref, -jnp.inf)
        l_ref[...] = jnp.zeros_like(l_ref)

    xb = x_ref[...].astype(jnp.bfloat16)
    s = jnp.dot(xb, w_ref[...], preferred_element_type=jnp.float32) + b_ref[...]

    @pl.when(p == 0)
    def _():
        m_new = jnp.maximum(m_ref[...], jnp.max(s, axis=-1, keepdims=True))
        l_ref[...] = l_ref[...] * jnp.exp(m_ref[...] - m_new) + jnp.sum(
            jnp.exp(s - m_new), axis=-1, keepdims=True
        )
        m_ref[...] = m_new

    @pl.when(p == 1)
    def _():
        inv_l = pl.reciprocal(l_ref[...], approx=False)
        o_ref[...] = (jnp.exp(s - m_ref[...]) * inv_l).astype(o_ref.dtype)


def _netty_vtiled(x, w, b, *, tb, tv, out_dtype, vmem_limit):
    Bp, F = x.shape
    _, V = w.shape
    Vp = _round_up(V, tv)
    if Vp != V:
        # Padded vocab columns: zero weight, -1e30 bias -> exp underflows to 0.
        w = jnp.pad(w, ((0, 0), (0, Vp - V)))
        b = jnp.pad(b, ((0, 0), (0, Vp - V)), constant_values=-1e30)
    nv = Vp // tv
    out_bytes = jnp.dtype(out_dtype).itemsize
    cost = pl.CostEstimate(
        flops=2 * 2 * Bp * F * Vp,                       # logits recomputed in pass 1
        transcendentals=2 * Bp * Vp,
        bytes_accessed=4 * Bp * F + 2 * (2 * F * Vp) + 2 * 4 * Vp + out_bytes * Bp * Vp,
    )
    return pl.pallas_call(
        _netty_vtiled_kernel,
        out_shape=jax.ShapeDtypeStruct((Bp, Vp), out_dtype),
        grid_spec=pltpu.PrefetchScalarGridSpec(
            num_scalar_prefetch=0,
            grid=(Bp // tb, 2, nv),                      # vocab (reduction) axis last
            in_specs=[
                pl.BlockSpec((tb, F), lambda i, p, j: (i, 0)),   # x resident per batch tile
                pl.BlockSpec((F, tv), lambda i, p, j: (0, j)),   # W streamed both passes
                pl.BlockSpec((1, tv), lambda i, p, j: (0, j)),
            ],
            # Pass 0 parks the (unwritten) output buffer on block (i, 0); only
            # pass 1 writes, so every flushed block carries normalized probs.
            out_specs=pl.BlockSpec((tb, tv), lambda i, p, j: (i, j * p)),
            scratch_shapes=[
                pltpu.VMEM((tb, 1), jnp.float32),        # running max m
                pltpu.VMEM((tb, 1), jnp.float32),        # running sum l
            ],
        ),
        compiler_params=pltpu.CompilerParams(
            dimension_semantics=("parallel", "arbitrary", "arbitrary"),
            vmem_limit_bytes=int(vmem_limit),
        ),
        cost_estimate=cost,
    )(x, w, b)


# ---------------------------------------------------------------------------
# Wrapper: path selection + padding.
# ---------------------------------------------------------------------------
@functools.partial(jax.jit, static_argnames=("tb", "tv", "out_dtype", "force_vtiled"))
def netty_forward(x, w, b, *, tb=256, tv=512, out_dtype=jnp.float32, force_vtiled=False):
    """x: (B, F) f32, w: (F, V) (bf16 recommended), b: (V,) -> softmax(x @ w + b)."""
    B, F = x.shape
    Fw, V = w.shape
    assert F == Fw, (F, Fw)
    out_bytes = jnp.dtype(out_dtype).itemsize

    x = x.astype(jnp.float32)                 # activations stay f32 (cast to bf16 in-kernel)
    w_bf = w.astype(jnp.bfloat16)             # no-op when W is stored bf16 (init_params)
    b2 = b.reshape(1, V).astype(jnp.float32)

    # Batch tile: multiple of 16 (bf16 MXU operand packs 16 rows per sublane group).
    tb = max(16, _round_up(min(int(tb), _round_up(B, 16)), 16))

    # Generation-aware VMEM cap: ~81% of per-core VMEM (52 MiB v7x, 104 MiB v5e/v6e).
    cap = (_vmem_capacity_bytes() * 13) // 16

    # Resident-plan working set, counting Pallas' default 2x buffering of every
    # operand (including the constant-index weight/bias) plus 25% scratch slack.
    resident_ws = int(
        1.25 * (2 * F * V * 2 + 2 * V * 4 + 2 * tb * F * 4 + 2 * tb * V * out_bytes)
    )
    use_vtiled = bool(force_vtiled) or resident_ws > cap

    if use_vtiled:
        tv = max(128, min(_round_up(int(tv), 128), _round_up(V, 128)))
        # Shrink the vocab tile until the (double-buffered) working set fits.
        while tv > 128 and int(
            1.25 * (2 * tb * F * 4 + 2 * F * tv * 2 + 2 * tv * 4 + 2 * tb * tv * out_bytes)
        ) > cap:
            tv = max(128, _round_up(tv // 2, 128))

    Bp = _round_up(B, tb)
    if Bp != B:
        x = jnp.pad(x, ((0, Bp - B), (0, 0)))  # padded rows are harmless, sliced off

    if use_vtiled:
        out = _netty_vtiled(x, w_bf, b2, tb=tb, tv=tv, out_dtype=out_dtype, vmem_limit=cap)
    else:
        out = _netty_resident(x, w_bf, b2, tb=tb, out_dtype=out_dtype, vmem_limit=cap)

    return out[:B, :V]


def init_params(key, n_inputs, vocab_size):
    """nn.Linear-style init (uniform +/- 1/sqrt(fan_in)); W stored pre-transposed
    as (n_inputs, vocab_size) and in bf16 so no per-call cast pass is needed."""
    kw, kb = jax.random.split(key)
    bound = 1.0 / jnp.sqrt(jnp.float32(n_inputs))
    w = jax.random.uniform(kw, (n_inputs, vocab_size), jnp.float32, -bound, bound)
    b = jax.random.uniform(kb, (vocab_size,), jnp.float32, -bound, bound)
    return w.astype(jnp.bfloat16), b


if __name__ == "__main__":
    batch, n_inputs, vocab_size = 32, 32, 256

    key = jax.random.PRNGKey(0)
    kx, kp = jax.random.split(key)
    x = jax.random.normal(kx, (batch, n_inputs), jnp.float32)
    w, b = init_params(kp, n_inputs, vocab_size)

    # Resident-weight path, 2-step batch grid (tb=16).
    out = netty_forward(x, w, b, tb=16)
    # V-tiled 2-pass online-softmax path, forced (grid = (2, 2, 2)).
    out_vt = netty_forward(x, w, b, tb=16, tv=128, force_vtiled=True)
    # bf16-output variant (bandwidth-optimized epilogue).
    out_bf = netty_forward(x, w, b, tb=16, out_dtype=jnp.bfloat16)
    jax.block_until_ready((out, out_vt, out_bf))

    # Reference with the same bf16 operand rounding the kernel uses.
    ref = jax.nn.softmax(
        x.astype(jnp.bfloat16).astype(jnp.float32) @ w.astype(jnp.float32) + b, axis=-1
    )

    assert out.shape == (batch, vocab_size) and out.dtype == jnp.float32
    assert out_vt.shape == (batch, vocab_size)
    assert out_bf.dtype == jnp.bfloat16
    assert jnp.allclose(out, ref, atol=2e-3), "resident path mismatch"
    assert jnp.allclose(out_vt, ref, atol=2e-3), "V-tiled path mismatch"
    assert jnp.allclose(out_bf.astype(jnp.float32), ref, atol=1e-2), "bf16 output mismatch"
    assert jnp.allclose(jnp.sum(out, axis=-1), 1.0, atol=1e-3)
    assert jnp.allclose(jnp.sum(out_vt, axis=-1), 1.0, atol=1e-3)

    print("KERNEL_OK")
</pallas_src>

<mosaic_0001>
module attributes {stable_mosaic.version = 11 : i64} {
  func.func @_netty_resident_kernel(%arg0: i32, %arg1: memref<16x32xf32, #tpu.memory_space<vmem>>, %arg2: memref<32x256xbf16, #tpu.memory_space<vmem>>, %arg3: memref<1x256xf32, #tpu.memory_space<vmem>>, %arg4: memref<16x256xf32, #tpu.memory_space<vmem>>) attributes {dimension_semantics = [#tpu.dimension_semantics<parallel>], iteration_bounds = array<i64: 2>, scalar_prefetch = 0 : i64, scratch_operands = 0 : i64, tpu.core_type = #tpu.core_type<tc>, window_params = [{transform_indices = @transform_0, window_bounds = array<i64: 16, 32>}, {pipeline_mode = #tpu.pipeline_mode<synchronous>, transform_indices = @transform_1, window_bounds = array<i64: 32, 256>}, {pipeline_mode = #tpu.pipeline_mode<synchronous>, transform_indices = @transform_2, window_bounds = array<i64: 1, 256>}, {transform_indices = @transform_3, window_bounds = array<i64: 16, 256>}]} {
    %c0 = arith.constant 0 : index
    %c0_0 = arith.constant 0 : index
    %0 = vector.load %arg1[%c0, %c0_0] : memref<16x32xf32, #tpu.memory_space<vmem>>, vector<16x32xf32>
    %1 = arith.truncf %0 : vector<16x32xf32> to vector<16x32xbf16>
    %c0_1 = arith.constant 0 : index
    %c0_2 = arith.constant 0 : index
    %2 = vector.load %arg2[%c0_1, %c0_2] : memref<32x256xbf16, #tpu.memory_space<vmem>>, vector<32x256xbf16>
    %cst = arith.constant dense<0.000000e+00> : vector<16x256xf32>
    %3 = tpu.matmul %1, %2, %cst {dimension_numbers = #tpu.dot_dimension_numbers<[1], [0], [0], [1], [0, 0, 1, 1], [], []>} : vector<16x32xbf16>, vector<32x256xbf16>, vector<16x256xf32> -> vector<16x256xf32>
    %c0_3 = arith.constant 0 : index
    %c0_4 = arith.constant 0 : index
    %4 = vector.load %arg3[%c0_3, %c0_4] : memref<1x256xf32, #tpu.memory_space<vmem>>, vector<1x256xf32>
    %5 = vector.broadcast %4 : vector<1x256xf32> to vector<16x256xf32>
    %6 = arith.addf %3, %5 : vector<16x256xf32>
    %cst_5 = arith.constant dense<0xFF800000> : vector<16xf32>
    %7 = vector.multi_reduction <maximumf>, %6, %cst_5 [1] : vector<16x256xf32> to vector<16xf32>
    %8 = vector.shape_cast %7 : vector<16xf32> to vector<16x1xf32>
    %9 = vector.broadcast %8 : vector<16x1xf32> to vector<16x256xf32>
    %10 = arith.subf %6, %9 : vector<16x256xf32>
    %11 = math.exp %10 : vector<16x256xf32>
    %cst_6 = arith.constant dense<0.000000e+00> : vector<16xf32>
    %12 = vector.multi_reduction <add>, %11, %cst_6 [1] : vector<16x256xf32> to vector<16xf32>
    %13 = vector.shape_cast %12 : vector<16xf32> to vector<16x1xf32>
    %14 = tpu.reciprocal %13 : vector<16x1xf32> -> vector<16x1xf32>
    %15 = vector.broadcast %14 : vector<16x1xf32> to vector<16x256xf32>
    %16 = arith.mulf %11, %15 : vector<16x256xf32>
    %c0_7 = arith.constant 0 : index
    %c0_8 = arith.constant 0 : index
    %17 = vector.load %arg4[%c0_7, %c0_8] : memref<16x256xf32, #tpu.memory_space<vmem>>, vector<16x256xf32>
    tpu.vector_store %arg4[%c0_7, %c0_8], %16 {strides = array<i32>} : memref<16x256xf32, #tpu.memory_space<vmem>>, vector<16x256xf32>,
    return
  }
  func.func @transform_0(%arg0: i32) -> (i32, i32) {
    %c0_i32 = arith.constant 0 : i32
    %c0_i32_0 = arith.constant 0 : i32
    return %arg0, %c0_i32 : i32, i32
  }
  func.func @transform_1(%arg0: i32) -> (i32, i32) {
    %c0_i32 = arith.constant 0 : i32
    %c0_i32_0 = arith.constant 0 : i32
    %c0_i32_1 = arith.constant 0 : i32
    return %c0_i32, %c0_i32_0 : i32, i32
  }
  func.func @transform_2(%arg0: i32) -> (i32, i32) {
    %c0_i32 = arith.constant 0 : i32
    %c0_i32_0 = arith.constant 0 : i32
    %c0_i32_1 = arith.constant 0 : i32
    return %c0_i32, %c0_i32_0 : i32, i32
  }
  func.func @transform_3(%arg0: i32) -> (i32, i32) {
    %c0_i32 = arith.constant 0 : i32
    %c0_i32_0 = arith.constant 0 : i32
    return %arg0, %c0_i32 : i32, i32
  }
}

</mosaic_0001>

<llo_original>
// kernel: netty_forward.1
$region0: #{netty_forward.1}
  #allocation0 [shape = 'u32[]', space=smem, size = 0x4, offset = 0x4, fixed_abs, tag = 'smem constant byte address 0x4 - core index']
  #allocation1 [shape = 'u32[72,128]{1,0:T(1,128)}', space=vmem, size = 0x9000, scoped, tag = 'internal scratch']
  %s0 = inlined_call_operand.hbm [shape: f32[32,32], index: 0, kind: input, shape index: {}]
  %s1 = inlined_call_operand.hbm [shape: bf16[32,256], index: 1, kind: input, shape index: {}]
  %s2 = inlined_call_operand.vmem [shape: f32[1,256], index: 2, kind: input, shape index: {}]
  %s3 = inlined_call_operand.hbm [shape: f32[32,256], index: 3, kind: output, shape index: {}]
  %s4 = sld [smem:[#allocation0]]
  $region53: #{netty_forward.1} parent=0
    _
  %s6 = ssub.s32 1, %s4
  %s7 = scalar_select 0, %s6, %s4
  $region1: #{netty_forward.1} parent=0
    #allocation2 [shape = 'u8[16384]{0}', space=vmem, size = 0x4000, scoped, tag = 'input window, operand 0']
    #allocation3 [shape = 's32[2]{0}', space=sflag, size = 0x8, scoped, tag = 'scoped memory for netty_forward.1']
    #allocation4 [shape = 's32[2]{0}', space=sflag, size = 0x8, scoped, tag = 'scoped memory for netty_forward.1']
    #allocation5 [shape = 'u8[16384]{0}', space=vmem, size = 0x4000, scoped, tag = 'input window, operand 1, single buffered']
    #allocation6 [shape = 's32[1]{0}', space=sflag, size = 0x4, scoped, tag = 'scoped memory for netty_forward.1']
    #allocation7 [shape = 'u8[32768]{0}', space=vmem, size = 0x8000, scoped, tag = 'output window, operand 0']
    %8 = vsyncpa [#allocation3], 0
    %s9 = scalar_lea.sflag [#allocation3], 1
    %10 = vsyncpa %s9, 0
    %11 = vsyncpa [#allocation6], 0
    %12 = vsyncpa [#allocation4], 0
    %s13 = scalar_lea.sflag [#allocation4], 1
    %14 = vsyncpa %s13, 0
    loop: start=0, step=1, limit=4
    $region2: #{netty_forward.1} parent=1 // loop_pre_header
      _
    $region3: #{netty_forward.1} parent=1 // loop_header
      %s16 = sphi 0, %s20
      %p17 = scmp.ge.s32.totalorder %s16, 4
      %s26 = sphi 0, %s28
      %s29 = sphi 0, %s26
      %s30 = sphi 0, %s29
      %s46 = sphi 0, %s30
      %s50 = sphi 0, %s50
      %s52 = sphi 0, %s50
      %s53 = sphi 0, %s52
      %s67 = sphi 0, %s53
      %s71 = sphi 0, %s71
      %s73 = sphi 0, %s71
      %s74 = sphi 0, %s73
      %s88 = sphi 0, %s74
      %s94 = sphi 0, %s96
      %s97 = sphi 0, %s94
      %s98 = sphi 0, %s97
      %s114 = sphi 0, %s98
    $region4: #{netty_forward.1} parent=1 // loop_header_branch
      %19 = sbr.rel (%p17) target = $region8
    $region5: #{netty_forward.1} parent=1 // loop_body
      %s21 = ssub.s32 %s16, 1
      %s22 = ssub.s32 %s16, 2
      %s23 = sadd.s32 %s16, 1
      %s24 = ssub.s32 %s16, %s23
      %p25 = scmp.eq.s32.totalorder %s24, 0
      %s27 = sadd.s32 %s26, 1
      %s28 = scalar_select %p25, %s26, %s27
      %p31 = pneg %p25
      %p32 = scmp.eq.s32.totalorder %s16, 1
      %p33 = por %p31, %p32
      %p34 = scmp.ne.s32.totalorder %s26, %s29
      %p35 = scmp.eq.s32.totalorder %s16, 0
      %p36 = por %p34, %p35
      %p37 = scmp.ne.s32.totalorder %s26, %s29
      %p38 = scmp.eq.s32.totalorder %s21, 1
      %p39 = por %p37, %p38
      %p40 = scmp.ne.s32.totalorder %s29, %s30
      %p41 = scmp.eq.s32.totalorder %s21, 0
      %p42 = por %p40, %p41
      %p43 = scmp.ne.s32.totalorder %s29, %s30
      %p44 = scmp.eq.s32.totalorder %s22, 1
      %p45 = por %p43, %p44
      %p47 = scmp.ne.s32.totalorder %s30, %s46
      %p48 = scmp.eq.s32.totalorder %s22, 0
      %p49 = por %p47, %p48
      %s51 = sadd.s32 %s50, 1
      %p54 = scmp.eq.s32.totalorder %s16, 1
      %p55 = scmp.ne.s32.totalorder %s50, %s52
      %p56 = scmp.eq.s32.totalorder %s16, 0
      %p57 = por %p55, %p56
      %p58 = scmp.ne.s32.totalorder %s50, %s52
      %p59 = scmp.eq.s32.totalorder %s21, 1
      %p60 = por %p58, %p59
      %p61 = scmp.ne.s32.totalorder %s52, %s53
      %p62 = scmp.eq.s32.totalorder %s21, 0
      %p63 = por %p61, %p62
      %p64 = scmp.ne.s32.totalorder %s52, %s53
      %p65 = scmp.eq.s32.totalorder %s22, 1
      %p66 = por %p64, %p65
      %p68 = scmp.ne.s32.totalorder %s53, %s67
      %p69 = scmp.eq.s32.totalorder %s22, 0
      %p70 = por %p68, %p69
      %s72 = sadd.s32 %s71, 1
      %p75 = scmp.eq.s32.totalorder %s16, 1
      %p76 = scmp.ne.s32.totalorder %s71, %s73
      %p77 = scmp.eq.s32.totalorder %s16, 0
      %p78 = por %p76, %p77
      %p79 = scmp.ne.s32.totalorder %s71, %s73
      %p80 = scmp.eq.s32.totalorder %s21, 1
      %p81 = por %p79, %p80
      %p82 = scmp.ne.s32.totalorder %s73, %s74
      %p83 = scmp.eq.s32.totalorder %s21, 0
      %p84 = por %p82, %p83
      %p85 = scmp.ne.s32.totalorder %s73, %s74
      %p86 = scmp.eq.s32.totalorder %s22, 1
      %p87 = por %p85, %p86
      %p89 = scmp.ne.s32.totalorder %s74, %s88
      %p90 = scmp.eq.s32.totalorder %s22, 0
      %p91 = por %p89, %p90
      %s92 = ssub.s32 %s16, %s23
      %p93 = scmp.eq.s32.totalorder %s92, 0
      %s95 = sadd.s32 %s94, 1
      %s96 = scalar_select %p93, %s94, %s95
      %p99 = pneg %p93
      %p100 = scmp.eq.s32.totalorder %s16, 1
      %p101 = por %p99, %p100
      %p102 = scmp.ne.s32.totalorder %s94, %s97
      %p103 = scmp.eq.s32.totalorder %s16, 0
      %p104 = por %p102, %p103
      %p105 = scmp.ne.s32.totalorder %s94, %s97
      %p106 = scmp.eq.s32.totalorder %s21, 1
      %p107 = por %p105, %p106
      %p108 = scmp.ne.s32.totalorder %s97, %s98
      %p109 = scmp.eq.s32.totalorder %s21, 0
      %p110 = por %p108, %p109
      %p111 = scmp.ne.s32.totalorder %s97, %s98
      %p112 = scmp.eq.s32.totalorder %s22, 1
      %p113 = por %p111, %p112
      %p115 = scmp.ne.s32.totalorder %s98, %s114
      %p116 = scmp.eq.s32.totalorder %s22, 0
      %p117 = por %p115, %p116
      %p118 = scmp.le.s32.totalorder 1, %s16
      %p119 = scmp.lt.s32.totalorder %s16, 3
      %p120 = pnand %p118, %p119
      %p121 = pneg %p120
      // Predicated region
      $region9: #{netty_forward.1} parent=5 // pred_check
        _
      $region10: #{netty_forward.1} parent=5 // pred_check_branch
        %123 = sbr.rel (%p120) target = $region12
      $region11: #{netty_forward.1} parent=5 // pred_region
        %s124 = ssub.s32 %s16, 1
        // Predicated region
        $region13: #{netty_forward.1} parent=11 // pred_check
          %p125 = pneg %p63
        $region14: #{netty_forward.1} parent=11 // pred_check_branch
          %127 = sbr.rel (%p125) target = $region16
        $region15: #{netty_forward.1} parent=11 // pred_region
          %129 = vsyncadd [#allocation6], 0
          %s130 = sshll.u32 %s1, 4
          %s131 = int_to_ptr.hbm [resolvable:$true] %s130
          %s132 = sshll.u32 [#allocation5], 4
          %s133 = int_to_ptr.vmem [resolvable:$true] %s132
          %138 = dma.hbm_to_vmem [thread:$0]  %s131, 512, %s133, [#allocation6], 128, 128, 8
        $region16: #{netty_forward.1} parent=11 // pred_fallthru
          _
        // Predicated region
        $region17: #{netty_forward.1} parent=11 // pred_check
          %p139 = pneg %p84
        $region18: #{netty_forward.1} parent=11 // pred_check_branch
          %141 = sbr.rel (%p139) target = $region20
        $region19: #{netty_forward.1} parent=11 // pred_region
          _
        $region20: #{netty_forward.1} parent=11 // pred_fallthru
          _
      $region12: #{netty_forward.1} parent=5 // pred_fallthru
        _
      %p142 = scmp.lt.s32.totalorder %s16, 2
      // Predicated region
      $region21: #{netty_forward.1} parent=5 // pred_check
        %p143 = pneg %p142
      $region22: #{netty_forward.1} parent=5 // pred_check_branch
        %145 = sbr.rel (%p143) target = $region24
      $region23: #{netty_forward.1} parent=5 // pred_region
        // Predicated region
        $region25: #{netty_forward.1} parent=23 // pred_check
          %p146 = pneg %p36
        $region26: #{netty_forward.1} parent=23 // pred_check_branch
          %148 = sbr.rel (%p146) target = $region28
        $region27: #{netty_forward.1} parent=23 // pred_region
          %s149 = sand.u32 %s26, 1
          %s150 = scalar_lea.sflag [#allocation3], %s149
          %s151 = sand.u32 %s26, 1
          %s152 = smul.addr %s151, 16
          %s153 = scalar_lea.vmem [#allocation2], %s152
          %s154 = smul.u32 2, %s16
          %156 = vsyncadd %s150, 0
          %s157 = smul.addr %s154, 8
          %s158 = scalar_lea.hbm %s0, %s157
          %s159 = sshll.u32 %s158, 4
          %s160 = int_to_ptr.hbm [resolvable:$true] %s159
          %s161 = sshll.u32 %s153, 4
          %s162 = int_to_ptr.vmem [resolvable:$true] %s161
          %167 = dma.hbm_to_vmem [thread:$0]  %s160, 256, %s162, %s150, 128, 128, 8
        $region28: #{netty_forward.1} parent=23 // pred_fallthru
          _
      $region24: #{netty_forward.1} parent=5 // pred_fallthru
        _
      %p168 = scmp.le.s32.totalorder 1, %s16
      %p169 = scmp.lt.s32.totalorder %s16, 3
      %p170 = pnand %p168, %p169
      %p171 = pneg %p170
      // Predicated region
      $region29: #{netty_forward.1} parent=5 // pred_check
        _
      $region30: #{netty_forward.1} parent=5 // pred_check_branch
        %173 = sbr.rel (%p170) target = $region32
      $region31: #{netty_forward.1} parent=5 // pred_region
        %s174 = ssub.s32 %s16, 1
        %s175 = sand.u32 %s29, 1
        %s176 = scalar_lea.sflag [#allocation3], %s175
        %s177 = sand.u32 %s29, 1
        %s178 = smul.addr %s177, 16
        %s179 = scalar_lea.vmem [#allocation2], %s178
        // Predicated region
        $region33: #{netty_forward.1} parent=31 // pred_check
          %p180 = pneg %p42
        $region34: #{netty_forward.1} parent=31 // pred_check_branch
          %182 = sbr.rel (%p180) target = $region36
        $region35: #{netty_forward.1} parent=31 // pred_region
          %184 = dma.done %s176, 256
        $region36: #{netty_forward.1} parent=31 // pred_fallthru
          _
        // Predicated region
        $region37: #{netty_forward.1} parent=31 // pred_check
          %p185 = pneg %p63
        $region38: #{netty_forward.1} parent=31 // pred_check_branch
          %187 = sbr.rel (%p185) target = $region40
        $region39: #{netty_forward.1} parent=31 // pred_region
          %189 = dma.done [#allocation6], 512
        $region40: #{netty_forward.1} parent=31 // pred_fallthru
          _
        %s190 = sand.u32 %s29, 1
        %s191 = scalar_lea.sflag [#allocation3], %s190
        %s192 = sand.u32 %s29, 1
        %s193 = smul.addr %s192, 16
        %s194 = scalar_lea.vmem [#allocation2], %s193
        %p195 = pneg %p42
        %p196 = pneg %p39
        %p197 = pneg %p63
        %p198 = pneg %p60
        %p199 = pneg %p84
        %p200 = pneg %p81
        %p201 = pneg %p110
        %p202 = pneg %p107
        %s203 = sand.u32 %s97, 1
        %s204 = scalar_lea.sflag [#allocation4], %s203
        %s205 = sand.u32 %s97, 1
        %s206 = smul.addr %s205, 32
        %s207 = scalar_lea.vmem [#allocation7], %s206
        %s208 = smul.u32 2, %s21
        %s209 = smul.u32 2, %s21
        %v211 = vld [vmem:[%s179] sm:$0xff]
        %v212 = vld [vmem:[%s179 + $0x8] sm:$0xff]
        %v213 = vpack.c.bf16 %v212, %v211
        %v214 = vld [vmem:[#allocation5] sm:$0xff]
        %v215 = vld [vmem:[#allocation5 + $0x8] sm:$0xff]
        %v216 = vld [vmem:[#allocation5 + $0x10] sm:$0xff]
        %v217 = vld [vmem:[#allocation5 + $0x18] sm:$0xff]
        %v218 = vld [vmem:[%s2] sm:$0x3]
        %v220 = vperm.slane %v218, 0
        %v221 = vperm.slane %v218, 1
        %v228 = vunpack.c.l.b16 %v214
        %v229 = vunpack.c.h.b16 %v214
        %v230 = vunpack.c.l.b16 %v215
        %v231 = vunpack.c.h.b16 %v215
        %v232 = vunpack.c.l.b16 %v216
        %v233 = vunpack.c.h.b16 %v216
        %v234 = vunpack.c.l.b16 %v217
        %v235 = vunpack.c.h.b16 %v217
        %v236 = vpack.c.b16 %v230, %v228
        %v237 = vpack.c.b16 %v231, %v229
        %v238 = vpack.c.b16 %v234, %v232
        %v239 = vpack.c.b16 %v235, %v233
        %vm244 = vcmask 261120
        %v246 = vsel %vm244, %v213, 0
        %248 = vmatpush.bf16.msra.mxu0 0
        %249 = vmatpush.bf16.msra.mxu0 0
        %250 = vmatpush.bf16.msra.mxu0 0
        %251 = vmatpush.bf16.msra.mxu0 0
        %252 = vmatpush.bf16.msra.mxu0 0
        %253 = vmatpush.bf16.msra.mxu0 0
        %254 = vmatpush.bf16.msra.mxu0 %v238
        %255 = vmatpush.bf16.msra.mxu0 %v236
        %256 = vmatmul.bf16.gmra.mxu0 %v246
        %v257 = vpop.f32.mrf.mxu0
        %v258 = vadd.f32 %v220, %v257
        %v259 = vpop.f32.mrf.mxu0
        %v260 = vadd.f32 %v220, %v259
        %261 = vdwg.mxu0
        %262 = vmatpush.bf16.msra.mxu0 0
        %263 = vmatpush.bf16.msra.mxu0 0
        %264 = vmatpush.bf16.msra.mxu0 0
        %265 = vmatpush.bf16.msra.mxu0 0
        %266 = vmatpush.bf16.msra.mxu0 0
        %267 = vmatpush.bf16.msra.mxu0 0
        %268 = vmatpush.bf16.msra.mxu0 %v239
        %269 = vmatpush.bf16.msra.mxu0 %v237
        %270 = vmatmul.bf16.gmra.mxu0 %v246
        %v271 = vpop.f32.mrf.mxu0
        %v272 = vadd.f32 %v221, %v271
        %v273 = vpop.f32.mrf.mxu0
        %v274 = vadd.f32 %v221, %v273
        %275 = vdwg.mxu0
        %v276 = vmax.f32 %v258, %v272
        %277 = vmax.xlane.f32.xlu0 %v276
        %v278 = vpop.xlane.xlu0 %277
        %v279 = vmax.f32 %v260, %v274
        %280 = vmax.xlane.f32.xlu0 %v279
        %v281 = vpop.xlane.xlu0 %280
        %v282 = vsub.f32 %v258, %v278
        %v283 = vsub.f32 %v272, %v278
        %v284 = vsub.f32 %v260, %v281
        %v285 = vsub.f32 %v274, %v281
        %v286 = vmul.f32 %v282, 1.442695
        %v287 = vpow.pop %v286
        %v288 = vmul.f32 %v283, 1.442695
        %v289 = vpow.pop %v288
        %v290 = vmul.f32 %v284, 1.442695
        %v291 = vpow.pop %v290
        %v292 = vmul.f32 %v285, 1.442695
        %v293 = vpow.pop %v292
        %v294 = vadd.f32 %v287, %v289
        %295 = vadd.xlane.f32.xlu0 %v294
        %v296 = vpop.xlane.xlu0 %295
        %v297 = vadd.f32 %v291, %v293
        %298 = vadd.xlane.f32.xlu0 %v297
        %v299 = vpop.xlane.xlu0 %298
        %v300 = vrcp.pop %v296
        %v301 = vmul.f32 %v296, %v300
        %v302 = vsub.f32 1.0, %v301
        %v303 = vmul.f32 %v300, %v302
        %v304 = vadd.f32 %v300, %v303
        %vm305 = vweird.f32 %v296
        %vm306 = vweird.f32 %v300
        %vm307 = vmor %vm305, %vm306
        %v308 = vsel %vm307, %v300, %v304
        %v309 = vand.u32 2147483647, %v296
        %vm310 = vcmp.eq.f32.partialorder %v309, 8.507059e+37
        %v311 = vand.u32 %v296, 2147483648
        %v312 = vor.u32 1.1754944e-38, %v311
        %v313 = vsel %vm310, %v312, %v308
        %v314 = vrcp.pop %v299
        %v315 = vmul.f32 %v299, %v314
        %v316 = vsub.f32 1.0, %v315
        %v317 = vmul.f32 %v314, %v316
        %v318 = vadd.f32 %v314, %v317
        %vm319 = vweird.f32 %v299
        %vm320 = vweird.f32 %v314
        %vm321 = vmor %vm319, %vm320
        %v322 = vsel %vm321, %v314, %v318
        %v323 = vand.u32 2147483647, %v299
        %vm324 = vcmp.eq.f32.partialorder %v323, 8.507059e+37
        %v325 = vand.u32 %v299, 2147483648
        %v326 = vor.u32 1.1754944e-38, %v325
        %v327 = vsel %vm324, %v326, %v322
        %v328 = vmul.f32 %v287, %v313
        %v329 = vmul.f32 %v289, %v313
        %v330 = vmul.f32 %v291, %v327
        %v331 = vmul.f32 %v293, %v327
        %332 = vst [vmem:[%s207] sm:$0xff] %v328
        %333 = vst [vmem:[%s207 + $0x8] sm:$0xff] %v329
        %334 = vst [vmem:[%s207 + $0x10] sm:$0xff] %v330
        %335 = vst [vmem:[%s207 + $0x18] sm:$0xff] %v331
        %s336 = sand.u32 %s97, 1
        %s337 = scalar_lea.sflag [#allocation4], %s336
        %s338 = sand.u32 %s97, 1
        %s339 = smul.addr %s338, 32
        %s340 = scalar_lea.vmem [#allocation7], %s339
        // Predicated region
        $region41: #{netty_forward.1} parent=31 // pred_check
          %p341 = pneg %p107
        $region42: #{netty_forward.1} parent=31 // pred_check_branch
          %343 = sbr.rel (%p341) target = $region44
        $region43: #{netty_forward.1} parent=31 // pred_region
          %s344 = smul.u32 2, %s21
          %346 = vsyncadd %s337, 0
          %s347 = smul.addr %s344, 2
          %s348 = smul.addr %s347, 8
          %s349 = scalar_lea.hbm %s3, %s348
          %s350 = sshll.u32 %s340, 4
          %s351 = int_to_ptr.vmem [resolvable:$true] %s350
          %s352 = sshll.u32 %s349, 4
          %s353 = int_to_ptr.hbm [resolvable:$true] %s352
          %358 = dma.vmem_to_hbm [thread:$0]  %s351, 512, %s353, %s337, 256, 256, 16
        $region44: #{netty_forward.1} parent=31 // pred_fallthru
          _
      $region32: #{netty_forward.1} parent=5 // pred_fallthru
        _
      %p359 = scmp.le.s32.totalorder 2, %s16
      // Predicated region
      $region45: #{netty_forward.1} parent=5 // pred_check
        %p360 = pneg %p359
      $region46: #{netty_forward.1} parent=5 // pred_check_branch
        %362 = sbr.rel (%p360) target = $region48
      $region47: #{netty_forward.1} parent=5 // pred_region
        %s363 = ssub.s32 %s16, 2
        // Predicated region
        $region49: #{netty_forward.1} parent=47 // pred_check
          %p364 = pneg %p113
        $region50: #{netty_forward.1} parent=47 // pred_check_branch
          %366 = sbr.rel (%p364) target = $region52
        $region51: #{netty_forward.1} parent=47 // pred_region
          %s367 = sand.u32 %s98, 1
          %s368 = scalar_lea.sflag [#allocation4], %s367
          %s369 = sand.u32 %s98, 1
          %s370 = smul.addr %s369, 32
          %s371 = scalar_lea.vmem [#allocation7], %s370
          %373 = dma.done %s368, 512
        $region52: #{netty_forward.1} parent=47 // pred_fallthru
          _
      $region48: #{netty_forward.1} parent=5 // pred_fallthru
        _
    $region6: #{netty_forward.1} parent=1 // loop_footer
      %s20 = sadd.s32 1, %s16
    $region7: #{netty_forward.1} parent=1 // loop_footer_branch
      %15 = sbr.rel target = $region3
    $region8: #{netty_forward.1} parent=1 // loop_exit
      _
    %374 = vsyncpa [#allocation3], 1
    %s375 = scalar_lea.sflag [#allocation3], 1
    %376 = vsyncpa %s375, 1
    %377 = vsyncpa [#allocation6], 1
    %378 = vsyncpa [#allocation4], 1
    %s379 = scalar_lea.sflag [#allocation4], 1
    %380 = vsyncpa %s379, 1

</llo_original>
